<compile_context>
chip_gen: v7x
topology: tpu7x:2x2x1
jax: 0.10.0
libtpu: 0.0.40
codegen_flags: <defaults>
</compile_context>

<pallas_src>
import jax
import jax.numpy as jnp
from jax.experimental import pallas as pl
from jax.experimental.pallas import tpu as pltpu


# ----------------------------- Pallas kernel --------------------------------

def gcn_fused_kernel(a_ref, x_ref, w_ref, b_ref, sel_ref, out_ref):
    """3-layer GCN encoder + dot-product edge decoder, fully fused.

    a_ref  : (N_pad, N_pad)     bf16   normalized adjacency D^-1/2 (A+I) D^-1/2
    x_ref  : (N_pad, D)         bf16   node features (zero-padded to D)
    w_ref  : (3, D, D)          bf16   stacked, zero-padded layer weights
    b_ref  : (3, D)             f32    stacked, zero-padded layer biases
    sel_ref: (N_pad, 2*E_pad)   bf16   [src | dst] one-hot selection columns
    out_ref: (1, E_pad)         f32    lane-dense edge scores
    """
    f32 = jnp.float32
    bf16 = jnp.bfloat16

    a = a_ref[...]                                    # (N, N) bf16
    h = x_ref[...]                                    # (N, D) bf16

    def gcn_layer(h_bf16, w_bf16, b_f32, relu):
        # H_out = A_hat @ (H_in W) + b   (bf16 MXU inputs, f32 accumulation;
        # bias-add / ReLU stay f32 — v5e has no bf16 VPU).
        m = jnp.dot(h_bf16, w_bf16, preferred_element_type=f32)
        m = jnp.dot(a, m.astype(bf16), preferred_element_type=f32) + b_f32
        return jnp.maximum(m, 0.0) if relu else m

    h = gcn_layer(h, w_ref[0], b_ref[0:1, :], True).astype(bf16)
    h = gcn_layer(h, w_ref[1], b_ref[1:2, :], True).astype(bf16)
    z = gcn_layer(h, w_ref[2], b_ref[2:3, :], False)  # (N, D) f32
    # NOTE: padded ("ghost") node rows of z equal the layer biases (their A_hat
    # rows/cols are zero).  Decode never selects them, so they are inert; any
    # future pooling over N_pad must mask them.

    # ---- fused decode, edge axis in lanes -----------------------------------
    # One bf16 selection matmul contracting the node axis (dim 0 of both
    # operands): z_both[d, e]        = z[src_e, d]   for e <  E_pad
    #            z_both[d, e+E_pad]  = z[dst_e, d]
    sel = sel_ref[...]                                # (N, 2*E_pad) bf16, exact 0/1
    z_both = jax.lax.dot_general(
        z.astype(bf16), sel,
        dimension_numbers=(((0,), (0,)), ((), ())),
        preferred_element_type=f32)                   # (D, 2*E_pad) f32

    e_pad = out_ref.shape[1]
    prod = z_both[:, :e_pad] * z_both[:, e_pad:]      # (D, E_pad) f32, full-lane
    ones_row = jnp.ones((1, prod.shape[0]), f32)
    out_ref[...] = jnp.dot(ones_row, prod, preferred_element_type=f32)


# ----------------------- one-time staging (hoisted) --------------------------

def _round_up(v, m):
    return (v + m - 1) // m * m


def prepare_gcn_inputs(x, a_hat, edge_label_index, params):
    """Pad / cast / pack everything the kernel needs.  Run ONCE per
    (graph, params, edge_label_index); not part of the per-call hot path."""
    (w1, b1), (w2, b2), (w3, b3) = params
    n, f_in = x.shape
    hidden = w1.shape[1]
    out_dim = w3.shape[1]
    d = max(f_in, hidden, out_dim)                    # common padded width
    n_pad = _round_up(n, 16)                          # bf16: 2 rows per sublane
    e = edge_label_index.shape[1]
    e_pad = _round_up(e, 128)                         # lane-dense decode/output

    bf16 = jnp.bfloat16
    a_p = jnp.zeros((n_pad, n_pad), bf16).at[:n, :n].set(a_hat.astype(bf16))
    x_p = jnp.zeros((n_pad, d), bf16).at[:n, :f_in].set(x.astype(bf16))

    def pad_w(w):
        return jnp.pad(w, ((0, d - w.shape[0]), (0, d - w.shape[1])))

    def pad_b(b):
        b = b.reshape(-1)
        return jnp.pad(b, (0, d - b.shape[0]))

    # Single stack+pad instead of per-layer dynamic-update-slices.
    w_slab = jnp.stack([pad_w(w1), pad_w(w2), pad_w(w3)]).astype(bf16)
    b_slab = jnp.stack([pad_b(b1), pad_b(b2), pad_b(b3)]).astype(jnp.float32)

    # One-hot selection slab (N_pad, 2*E_pad): columns [0, E_pad) pick src
    # nodes, [E_pad, 2*E_pad) pick dst nodes.  Padded edge columns use index
    # -1 so they match nothing -> padded scores are exactly 0.
    idx = jnp.full((2, e_pad), -1, jnp.int32).at[:, :e].set(
        edge_label_index.astype(jnp.int32))
    node_ids = jnp.arange(n_pad, dtype=jnp.int32)[:, None]       # (N_pad, 1)
    sel_src = (node_ids == idx[0][None, :])                      # (N_pad, E_pad)
    sel_dst = (node_ids == idx[1][None, :])
    sel_slab = jnp.concatenate([sel_src, sel_dst], axis=1).astype(bf16)

    return (a_p, x_p, w_slab, b_slab, sel_slab), e, e_pad


# ------------------------------ jitted forward --------------------------------

@jax.jit
def gcn_forward_staged(a_p, x_p, w_slab, b_slab, sel_slab):
    """Per-call hot path: exactly one pallas_call over pre-staged slabs."""
    e_pad = sel_slab.shape[1] // 2
    vmem = pl.BlockSpec(memory_space=pltpu.MemorySpace.VMEM)
    return pl.pallas_call(
        gcn_fused_kernel,
        out_shape=jax.ShapeDtypeStruct((1, e_pad), jnp.float32),
        in_specs=[vmem] * 5,
        out_specs=vmem,
    )(a_p, x_p, w_slab, b_slab, sel_slab)


def gcn_forward(x, a_hat, edge_label_index, params):
    """Convenience wrapper (stage + run + slice).  Prefer calling
    prepare_gcn_inputs() once and gcn_forward_staged() repeatedly."""
    slabs, e, _ = prepare_gcn_inputs(x, a_hat, edge_label_index, params)
    return gcn_forward_staged(*slabs)[0, :e]


# ------------------------------ graph / params -------------------------------

def normalized_adjacency(edge_index, num_nodes):
    """Dense D^{-1/2}(A + I)D^{-1/2}; A[dst, src] += 1 per edge (PyG gcn_norm)."""
    src, dst = edge_index[0], edge_index[1]
    a = jnp.zeros((num_nodes, num_nodes), jnp.float32)
    a = a.at[dst, src].add(1.0)
    a = a + jnp.eye(num_nodes, dtype=jnp.float32)     # add self loops
    deg = a.sum(axis=1)
    dinv = jnp.where(deg > 0, 1.0 / jnp.sqrt(deg), 0.0)
    return dinv[:, None] * a * dinv[None, :]


def init_params(key, feature_num, hidden_channels, out_num):
    """Glorot-ish weights, zero biases.  W is (in, out); bias (1, out)."""
    def layer(k, fan_in, fan_out):
        scale = jnp.sqrt(6.0 / (fan_in + fan_out))
        w = jax.random.uniform(k, (fan_in, fan_out), jnp.float32, -scale, scale)
        b = jnp.zeros((1, fan_out), jnp.float32)
        return w, b

    k1, k2, k3 = jax.random.split(key, 3)
    return (layer(k1, feature_num, hidden_channels),
            layer(k2, hidden_channels, hidden_channels),
            layer(k3, hidden_channels, out_num))


def gcn_forward_ref(x, a_hat, edge_label_index, params,
                    match_kernel_precision=False):
    """Pure-JAX reference.  If match_kernel_precision, mirror the kernel's
    bf16 rounding of the MXU inputs (A_hat, X, W, intermediates, and z before
    the decode selection matmul)."""
    if match_kernel_precision:
        cast = lambda t: t.astype(jnp.bfloat16).astype(jnp.float32)
    else:
        cast = lambda t: t
    (w1, b1), (w2, b2), (w3, b3) = params
    a = cast(a_hat)

    def layer(h, w, b, relu):
        m = cast(h) @ cast(w)
        m = a @ cast(m) + b.reshape(1, -1)
        return jnp.maximum(m, 0.0) if relu else m

    h = layer(x, w1, b1, True)
    h = layer(h, w2, b2, True)
    z = layer(h, w3, b3, False)
    z = cast(z)   # kernel decode bf16-rounds z before the selection matmul
    return jnp.sum(z[edge_label_index[0]] * z[edge_label_index[1]], axis=-1)


# ----------------------------------- main ------------------------------------

if __name__ == "__main__":
    key = jax.random.PRNGKey(0)
    k_feat, k_param, k_src, k_off, k_lbl = jax.random.split(key, 5)

    num_nodes = 16
    feature_num = 8
    hidden_channels = 32
    out_num = 16
    num_edges = 24
    num_label_edges = 8

    # Node features (N, F).
    x = jax.random.normal(k_feat, (num_nodes, feature_num), jnp.float32)

    # Random directed edges without self-loops.
    src = jax.random.randint(k_src, (num_edges,), 0, num_nodes)
    off = jax.random.randint(k_off, (num_edges,), 1, num_nodes)
    dst = (src + off) % num_nodes
    edge_index = jnp.stack([src, dst]).astype(jnp.int32)          # (2, E)

    # Edges to score in decode().
    edge_label_index = jax.random.randint(
        k_lbl, (2, num_label_edges), 0, num_nodes).astype(jnp.int32)

    params = init_params(k_param, feature_num, hidden_channels, out_num)

    # A_hat computed once and reused (hoisted out of the forward pass).
    a_hat = normalized_adjacency(edge_index, num_nodes)

    # One-time staging (padding / bf16 slabs / one-hot decode slab).
    slabs, e, e_pad = prepare_gcn_inputs(x, a_hat, edge_label_index, params)
    slabs = jax.block_until_ready(slabs)

    # Per-call hot path: single fused pallas_call.
    out_full = jax.block_until_ready(gcn_forward_staged(*slabs))
    out = out_full[0, :e]
    assert out.shape == (num_label_edges,)

    # Tight check against a precision-matched reference (validates kernel math).
    ref_match = gcn_forward_ref(x, a_hat, edge_label_index, params,
                                match_kernel_precision=True)
    assert jnp.allclose(out, ref_match, atol=1e-3, rtol=1e-3), (out, ref_match)

    # Loose check against the pure-f32 reference (bf16 MXU inputs by design).
    ref_f32 = gcn_forward_ref(x, a_hat, edge_label_index, params)
    assert jnp.allclose(out, ref_f32, atol=1e-1, rtol=1e-1), (out, ref_f32)

    # Convenience wrapper path still works.
    out2 = jax.block_until_ready(gcn_forward(x, a_hat, edge_label_index, params))
    assert jnp.allclose(out, out2), (out, out2)

    print("KERNEL_OK")
</pallas_src>

<mosaic_0001>
module attributes {stable_mosaic.version = 11 : i64} {
  func.func @gcn_fused_kernel(%arg0: memref<16x16xbf16, #tpu.memory_space<vmem>>, %arg1: memref<16x32xbf16, #tpu.memory_space<vmem>>, %arg2: memref<3x32x32xbf16, #tpu.memory_space<vmem>>, %arg3: memref<3x32xf32, #tpu.memory_space<vmem>>, %arg4: memref<16x256xbf16, #tpu.memory_space<vmem>>, %arg5: memref<1x128xf32, #tpu.memory_space<vmem>>) attributes {dimension_semantics = [], scalar_prefetch = 0 : i64, scratch_operands = 0 : i64, tpu.core_type = #tpu.core_type<tc>} {
    %c0 = arith.constant 0 : index
    %c0_0 = arith.constant 0 : index
    %0 = vector.load %arg0[%c0, %c0_0] : memref<16x16xbf16, #tpu.memory_space<vmem>>, vector<16x16xbf16>
    %c0_1 = arith.constant 0 : index
    %c0_2 = arith.constant 0 : index
    %1 = vector.load %arg1[%c0_1, %c0_2] : memref<16x32xbf16, #tpu.memory_space<vmem>>, vector<16x32xbf16>
    %c0_3 = arith.constant 0 : index
    %c0_4 = arith.constant 0 : index
    %c0_5 = arith.constant 0 : index
    %2 = vector.load %arg2[%c0_3, %c0_4, %c0_5] : memref<3x32x32xbf16, #tpu.memory_space<vmem>>, vector<1x32x32xbf16>
    %3 = vector.shape_cast %2 : vector<1x32x32xbf16> to vector<32x32xbf16>
    %c0_6 = arith.constant 0 : index
    %c0_7 = arith.constant 0 : index
    %4 = vector.load %arg3[%c0_6, %c0_7] : memref<3x32xf32, #tpu.memory_space<vmem>>, vector<1x32xf32>
    %cst = arith.constant dense<0.000000e+00> : vector<16x32xf32>
    %5 = tpu.matmul %1, %3, %cst {dimension_numbers = #tpu.dot_dimension_numbers<[1], [0], [0], [1], [0, 0, 1, 1], [], []>} : vector<16x32xbf16>, vector<32x32xbf16>, vector<16x32xf32> -> vector<16x32xf32>
    %6 = arith.truncf %5 : vector<16x32xf32> to vector<16x32xbf16>
    %cst_8 = arith.constant dense<0.000000e+00> : vector<16x32xf32>
    %7 = tpu.matmul %0, %6, %cst_8 {dimension_numbers = #tpu.dot_dimension_numbers<[1], [0], [0], [1], [0, 0, 1, 1], [], []>} : vector<16x16xbf16>, vector<16x32xbf16>, vector<16x32xf32> -> vector<16x32xf32>
    %8 = vector.broadcast %4 : vector<1x32xf32> to vector<16x32xf32>
    %9 = arith.addf %7, %8 : vector<16x32xf32>
    %cst_9 = arith.constant 0.000000e+00 : f32
    %10 = vector.broadcast %cst_9 : f32 to vector<16x32xf32>
    %11 = arith.maximumf %9, %10 : vector<16x32xf32>
    %12 = arith.truncf %11 : vector<16x32xf32> to vector<16x32xbf16>
    %c1 = arith.constant 1 : index
    %c0_10 = arith.constant 0 : index
    %c0_11 = arith.constant 0 : index
    %13 = vector.load %arg2[%c1, %c0_10, %c0_11] : memref<3x32x32xbf16, #tpu.memory_space<vmem>>, vector<1x32x32xbf16>
    %14 = vector.shape_cast %13 : vector<1x32x32xbf16> to vector<32x32xbf16>
    %c1_12 = arith.constant 1 : index
    %c0_13 = arith.constant 0 : index
    %15 = vector.load %arg3[%c1_12, %c0_13] : memref<3x32xf32, #tpu.memory_space<vmem>>, vector<1x32xf32>
    %cst_14 = arith.constant dense<0.000000e+00> : vector<16x32xf32>
    %16 = tpu.matmul %12, %14, %cst_14 {dimension_numbers = #tpu.dot_dimension_numbers<[1], [0], [0], [1], [0, 0, 1, 1], [], []>} : vector<16x32xbf16>, vector<32x32xbf16>, vector<16x32xf32> -> vector<16x32xf32>
    %17 = arith.truncf %16 : vector<16x32xf32> to vector<16x32xbf16>
    %cst_15 = arith.constant dense<0.000000e+00> : vector<16x32xf32>
    %18 = tpu.matmul %0, %17, %cst_15 {dimension_numbers = #tpu.dot_dimension_numbers<[1], [0], [0], [1], [0, 0, 1, 1], [], []>} : vector<16x16xbf16>, vector<16x32xbf16>, vector<16x32xf32> -> vector<16x32xf32>
    %19 = vector.broadcast %15 : vector<1x32xf32> to vector<16x32xf32>
    %20 = arith.addf %18, %19 : vector<16x32xf32>
    %cst_16 = arith.constant 0.000000e+00 : f32
    %21 = vector.broadcast %cst_16 : f32 to vector<16x32xf32>
    %22 = arith.maximumf %20, %21 : vector<16x32xf32>
    %23 = arith.truncf %22 : vector<16x32xf32> to vector<16x32xbf16>
    %c2 = arith.constant 2 : index
    %c0_17 = arith.constant 0 : index
    %c0_18 = arith.constant 0 : index
    %24 = vector.load %arg2[%c2, %c0_17, %c0_18] : memref<3x32x32xbf16, #tpu.memory_space<vmem>>, vector<1x32x32xbf16>
    %25 = vector.shape_cast %24 : vector<1x32x32xbf16> to vector<32x32xbf16>
    %c2_19 = arith.constant 2 : index
    %c0_20 = arith.constant 0 : index
    %26 = vector.load %arg3[%c2_19, %c0_20] : memref<3x32xf32, #tpu.memory_space<vmem>>, vector<1x32xf32>
    %cst_21 = arith.constant dense<0.000000e+00> : vector<16x32xf32>
    %27 = tpu.matmul %23, %25, %cst_21 {dimension_numbers = #tpu.dot_dimension_numbers<[1], [0], [0], [1], [0, 0, 1, 1], [], []>} : vector<16x32xbf16>, vector<32x32xbf16>, vector<16x32xf32> -> vector<16x32xf32>
    %28 = arith.truncf %27 : vector<16x32xf32> to vector<16x32xbf16>
    %cst_22 = arith.constant dense<0.000000e+00> : vector<16x32xf32>
    %29 = tpu.matmul %0, %28, %cst_22 {dimension_numbers = #tpu.dot_dimension_numbers<[1], [0], [0], [1], [0, 0, 1, 1], [], []>} : vector<16x16xbf16>, vector<16x32xbf16>, vector<16x32xf32> -> vector<16x32xf32>
    %30 = vector.broadcast %26 : vector<1x32xf32> to vector<16x32xf32>
    %31 = arith.addf %29, %30 : vector<16x32xf32>
    %c0_23 = arith.constant 0 : index
    %c0_24 = arith.constant 0 : index
    %32 = vector.load %arg4[%c0_23, %c0_24] : memref<16x256xbf16, #tpu.memory_space<vmem>>, vector<16x256xbf16>
    %33 = arith.truncf %31 : vector<16x32xf32> to vector<16x32xbf16>
    %cst_25 = arith.constant dense<0.000000e+00> : vector<32x256xf32>
    %34 = tpu.matmul %33, %32, %cst_25 {dimension_numbers = #tpu.dot_dimension_numbers<[0], [0], [1], [1], [0, 1, 1, 1], [], []>} : vector<16x32xbf16>, vector<16x256xbf16>, vector<32x256xf32> -> vector<32x256xf32>
    %35 = vector.extract_strided_slice %34 {offsets = [0, 0], sizes = [32, 128], strides = [1, 1]} : vector<32x256xf32> to vector<32x128xf32>
    %36 = vector.extract_strided_slice %34 {offsets = [0, 128], sizes = [32, 128], strides = [1, 1]} : vector<32x256xf32> to vector<32x128xf32>
    %37 = arith.mulf %35, %36 : vector<32x128xf32>
    %cst_26 = arith.constant 1.000000e+00 : f32
    %38 = vector.broadcast %cst_26 : f32 to vector<1x32xf32>
    %cst_27 = arith.constant dense<0.000000e+00> : vector<1x128xf32>
    %39 = tpu.matmul %38, %37, %cst_27 {dimension_numbers = #tpu.dot_dimension_numbers<[1], [0], [0], [1], [0, 0, 1, 1], [], []>} : vector<1x32xf32>, vector<32x128xf32>, vector<1x128xf32> -> vector<1x128xf32>
    %c0_28 = arith.constant 0 : index
    %c0_29 = arith.constant 0 : index
    %40 = vector.load %arg5[%c0_28, %c0_29] : memref<1x128xf32, #tpu.memory_space<vmem>>, vector<1x128xf32>
    tpu.vector_store %arg5[%c0_28, %c0_29], %39 {strides = array<i32>} : memref<1x128xf32, #tpu.memory_space<vmem>>, vector<1x128xf32>,
    return
  }
}

</mosaic_0001>

<llo_original>
// kernel: gcn_forward_staged.1
$region0: #{gcn_forward_staged.1}
  #allocation0 [shape = 'u32[]', space=smem, size = 0x4, offset = 0x4, fixed_abs, tag = 'smem constant byte address 0x4 - core index']
  #allocation1 [shape = 'u32[144,128]{1,0:T(1,128)}', space=vmem, size = 0x12000, scoped, tag = 'internal scratch']
  %s0 = inlined_call_operand.hbm [shape: bf16[16,16], index: 0, kind: input, shape index: {}]
  %s1 = inlined_call_operand.hbm [shape: bf16[16,32], index: 1, kind: input, shape index: {}]
  %s2 = inlined_call_operand.hbm [shape: bf16[3,32,32], index: 2, kind: input, shape index: {}]
  %s3 = inlined_call_operand.vmem [shape: f32[3,32], index: 3, kind: input, shape index: {}]
  %s4 = inlined_call_operand.hbm [shape: bf16[16,256], index: 4, kind: input, shape index: {}]
  %s5 = inlined_call_operand.hbm [shape: f32[1,128], index: 5, kind: output, shape index: {}]
  %s6 = sld [smem:[#allocation0]]
  $region46: #{gcn_forward_staged.1} parent=0
    _
  %s8 = ssub.s32 1, %s6
  %s9 = scalar_select 0, %s8, %s6
  $region1: #{gcn_forward_staged.1} parent=0
    #allocation2 [shape = 'u8[4096]{0}', space=vmem, size = 0x1000, scoped, tag = 'input window, operand 0, single buffered']
    #allocation3 [shape = 's32[1]{0}', space=sflag, size = 0x4, scoped, tag = 'scoped memory for gcn_forward_staged.1']
    #allocation4 [shape = 's32[1]{0}', space=sflag, size = 0x4, scoped, tag = 'scoped memory for gcn_forward_staged.1']
    #allocation5 [shape = 'u8[4096]{0}', space=vmem, size = 0x1000, scoped, tag = 'input window, operand 1, single buffered']
    #allocation6 [shape = 's32[1]{0}', space=sflag, size = 0x4, scoped, tag = 'scoped memory for gcn_forward_staged.1']
    #allocation7 [shape = 'u8[24576]{0}', space=vmem, size = 0x6000, scoped, tag = 'input window, operand 2, single buffered']
    #allocation8 [shape = 'u8[8192]{0}', space=vmem, size = 0x2000, scoped, tag = 'input window, operand 4, single buffered']
    #allocation9 [shape = 's32[1]{0}', space=sflag, size = 0x4, scoped, tag = 'scoped memory for gcn_forward_staged.1']
    #allocation10 [shape = 'u8[512]{0}', space=vmem, size = 0x400, scoped, tag = 'output window, operand 0, single buffered']
    %10 = vsyncpa [#allocation3], 0
    %11 = vsyncpa [#allocation6], 0
    %12 = vsyncpa [#allocation9], 0
    %13 = vsyncpa [#allocation4], 0
    // Predicated region
    $region2: #{gcn_forward_staged.1} parent=1 // pred_check
      _
    $region3: #{gcn_forward_staged.1} parent=1 // pred_check_branch
      %15 = sbr.rel (0) target = $region5
    $region4: #{gcn_forward_staged.1} parent=1 // pred_region
      %s17 = ssub.s32 128, 128
      %18 = vsyncadd [#allocation3], %s17
      %s19 = sshll.u32 [#allocation2], 4
      %s20 = int_to_ptr.vmem [resolvable:$true] %s19
      %25 = dma.hbm_to_vmem [thread:$0]  %s0, 128, %s20, [#allocation3], 64, 64, 4
    $region5: #{gcn_forward_staged.1} parent=1 // pred_fallthru
      _
    // Predicated region
    $region6: #{gcn_forward_staged.1} parent=1 // pred_check
      _
    $region7: #{gcn_forward_staged.1} parent=1 // pred_check_branch
      %27 = sbr.rel (0) target = $region9
    $region8: #{gcn_forward_staged.1} parent=1 // pred_region
      %s29 = ssub.s32 128, 128
      %30 = vsyncadd [#allocation6], %s29
      %s31 = sshll.u32 [#allocation5], 4
      %s32 = int_to_ptr.vmem [resolvable:$true] %s31
      %37 = dma.hbm_to_vmem [thread:$0]  %s1, 128, %s32, [#allocation6], 64, 64, 4
    $region9: #{gcn_forward_staged.1} parent=1 // pred_fallthru
      _
    // Predicated region
    $region10: #{gcn_forward_staged.1} parent=1 // pred_check
      _
    $region11: #{gcn_forward_staged.1} parent=1 // pred_check_branch
      %39 = sbr.rel (0) target = $region13
    $region12: #{gcn_forward_staged.1} parent=1 // pred_region
      %s41 = ssub.s32 768, 768
      %42 = vsyncadd [#allocation6], %s41
      %s43 = sshll.u32 [#allocation7], 4
      %s44 = int_to_ptr.vmem [resolvable:$true] %s43
      %49 = dma.hbm_to_vmem [thread:$0]  %s2, 768, %s44, [#allocation6], 64, 64, 4
    $region13: #{gcn_forward_staged.1} parent=1 // pred_fallthru
      _
    // Predicated region
    $region14: #{gcn_forward_staged.1} parent=1 // pred_check
      _
    $region15: #{gcn_forward_staged.1} parent=1 // pred_check_branch
      %51 = sbr.rel (0) target = $region17
    $region16: #{gcn_forward_staged.1} parent=1 // pred_region
      _
    $region17: #{gcn_forward_staged.1} parent=1 // pred_fallthru
      _
    // Predicated region
    $region18: #{gcn_forward_staged.1} parent=1 // pred_check
      _
    $region19: #{gcn_forward_staged.1} parent=1 // pred_check_branch
      %53 = sbr.rel (0) target = $region21
    $region20: #{gcn_forward_staged.1} parent=1 // pred_region
      %s55 = ssub.s32 256, 256
      %56 = vsyncadd [#allocation9], %s55
      %s57 = sshll.u32 [#allocation8], 4
      %s58 = int_to_ptr.vmem [resolvable:$true] %s57
      %63 = dma.hbm_to_vmem [thread:$0]  %s4, 256, %s58, [#allocation9], 128, 128, 8
    $region21: #{gcn_forward_staged.1} parent=1 // pred_fallthru
      _
    // Predicated region
    $region22: #{gcn_forward_staged.1} parent=1 // pred_check
      _
    $region23: #{gcn_forward_staged.1} parent=1 // pred_check_branch
      %65 = sbr.rel (0) target = $region25
    $region24: #{gcn_forward_staged.1} parent=1 // pred_region
      %66 = dma.done [#allocation3], 128
    $region25: #{gcn_forward_staged.1} parent=1 // pred_fallthru
      _
    // Predicated region
    $region26: #{gcn_forward_staged.1} parent=1 // pred_check
      _
    $region27: #{gcn_forward_staged.1} parent=1 // pred_check_branch
      %68 = sbr.rel (0) target = $region29
    $region28: #{gcn_forward_staged.1} parent=1 // pred_region
      %69 = dma.done [#allocation6], 128
    $region29: #{gcn_forward_staged.1} parent=1 // pred_fallthru
      _
    // Predicated region
    $region30: #{gcn_forward_staged.1} parent=1 // pred_check
      _
    $region31: #{gcn_forward_staged.1} parent=1 // pred_check_branch
      %71 = sbr.rel (0) target = $region33
    $region32: #{gcn_forward_staged.1} parent=1 // pred_region
      %72 = dma.done [#allocation6], 768
    $region33: #{gcn_forward_staged.1} parent=1 // pred_fallthru
      _
    // Predicated region
    $region34: #{gcn_forward_staged.1} parent=1 // pred_check
      _
    $region35: #{gcn_forward_staged.1} parent=1 // pred_check_branch
      %74 = sbr.rel (0) target = $region37
    $region36: #{gcn_forward_staged.1} parent=1 // pred_region
      %75 = dma.done [#allocation9], 256
    $region37: #{gcn_forward_staged.1} parent=1 // pred_fallthru
      _
    %v77 = vld [vmem:[#allocation2] sm:$0xf]
    %v78 = vld [vmem:[#allocation2 + $0x4] sm:$0xf]
    %v79 = vld [vmem:[#allocation5] sm:$0xf]
    %v80 = vld [vmem:[#allocation5 + $0x4] sm:$0xf]
    %v81 = vld [vmem:[#allocation7] sm:$0xf]
    %v82 = vld [vmem:[#allocation7 + $0x4] sm:$0xf]
    %v83 = vld [vmem:[#allocation7 + $0x8] sm:$0xf]
    %v84 = vld [vmem:[#allocation7 + $0xc] sm:$0xf]
    %v85 = vld [vmem:[%s3] sm:$0x1]
    %v88 = vunpack.c.l.b16 %v79
    %v89 = vunpack.c.l.b16 %v80
    %v90 = vpack.c.b16 %v89, %v88
    %v95 = vunpack.c.l.b16 %v81
    %v96 = vunpack.c.l.b16 %v82
    %v97 = vunpack.c.l.b16 %v83
    %v98 = vunpack.c.l.b16 %v84
    %v99 = vpack.c.b16 %v96, %v95
    %v100 = vpack.c.b16 %v98, %v97
    %vm103 = vcmask 261120
    %v105 = vsel %vm103, %v90, 0
    %107 = vmatprep.subr.bf16.mxu0 0
    %108 = vmatpush1.bf16.msra.mxu0 %v99
    %109 = vmatprep.subr.bf16.mxu0 0
    %110 = vmatpush1.bf16.msra.mxu0 %v100
    %111 = vmatprep.subr.bf16.mxu0 0
    %112 = vmatpush1.bf16.msra.mxu0 0
    %113 = vmatprep.subr.bf16.mxu0 0
    %114 = vmatpush1.bf16.msra.mxu0 0
    %115 = vmatprep.subr.bf16.mxu0 0
    %116 = vmatpush1.bf16.msra.mxu0 0
    %117 = vmatprep.subr.bf16.mxu0 0
    %118 = vmatpush1.bf16.msra.mxu0 0
    %119 = vmatprep.subr.bf16.mxu0 0
    %120 = vmatpush1.bf16.msra.mxu0 0
    %121 = vmatprep.subr.bf16.mxu0 0
    %122 = vmatpush1.bf16.msra.mxu0 0
    %123 = vmatprep.subr.bf16.mxu0 0
    %124 = vmatpush1.bf16.msra.mxu0 0
    %125 = vmatprep.subr.bf16.mxu0 0
    %126 = vmatpush1.bf16.msra.mxu0 0
    %127 = vmatprep.subr.bf16.mxu0 0
    %128 = vmatpush1.bf16.msra.mxu0 0
    %129 = vmatprep.subr.bf16.mxu0 0
    %130 = vmatpush1.bf16.msra.mxu0 0
    %131 = vmatprep.subr.bf16.mxu0 0
    %132 = vmatpush1.bf16.msra.mxu0 0
    %133 = vmatprep.subr.bf16.mxu0 0
    %134 = vmatpush1.bf16.msra.mxu0 0
    %135 = vmatprep.subr.bf16.mxu0 0
    %136 = vmatpush1.bf16.msra.mxu0 0
    %137 = vmatprep.subr.bf16.mxu0 0
    %138 = vmatpush1.bf16.msra.mxu0 0
    %139 = vmatprep.mubr.bf16.mxu0 0
    %140 = vmatmul.mubr.bf16.gmra.mrb[0].mxu0 %v105
    %v141 = vpop.f32.mrb[0].mxu0
    %v142 = vadd.f32 0.0, %v141
    %v143 = vpop.f32.mrb[0].mxu0
    %v144 = vpop.f32.mrb[0].mxu0
    %v145 = vadd.f32 0.0, %v144
    %v146 = vpop.f32.mrb[0].mxu0
    %147 = vdwg.mxu0
    %v148 = vpack.c.bf16 %v145, %v142
    %v149 = vlaneseq
    %v150 = vshrl.u32 %v149, 7
    %v151 = vsub.s32 0, %v150
    %v152 = vrot.slane %v85, %v151
    %v155 = vunpack.c.l.b16 %v77
    %v156 = vunpack.c.l.b16 %v78
    %v157 = vpack.c.b16 %v156, %v155
    %vm158 = vcmask 130048
    %v160 = vsel %vm158, %v157, 0
    %162 = vmatprep.subr.bf16.mxu0 0
    %163 = vmatpush1.bf16.msra.mxu0 %v148
    %164 = vmatprep.subr.bf16.mxu0 0
    %165 = vmatpush1.bf16.msra.mxu0 0
    %166 = vmatprep.subr.bf16.mxu0 0
    %167 = vmatpush1.bf16.msra.mxu0 0
    %168 = vmatprep.subr.bf16.mxu0 0
    %169 = vmatpush1.bf16.msra.mxu0 0
    %170 = vmatprep.subr.bf16.mxu0 0
    %171 = vmatpush1.bf16.msra.mxu0 0
    %172 = vmatprep.subr.bf16.mxu0 0
    %173 = vmatpush1.bf16.msra.mxu0 0
    %174 = vmatprep.subr.bf16.mxu0 0
    %175 = vmatpush1.bf16.msra.mxu0 0
    %176 = vmatprep.subr.bf16.mxu0 0
    %177 = vmatpush1.bf16.msra.mxu0 0
    %178 = vmatprep.subr.bf16.mxu0 0
    %179 = vmatpush1.bf16.msra.mxu0 0
    %180 = vmatprep.subr.bf16.mxu0 0
    %181 = vmatpush1.bf16.msra.mxu0 0
    %182 = vmatprep.subr.bf16.mxu0 0
    %183 = vmatpush1.bf16.msra.mxu0 0
    %184 = vmatprep.subr.bf16.mxu0 0
    %185 = vmatpush1.bf16.msra.mxu0 0
    %186 = vmatprep.subr.bf16.mxu0 0
    %187 = vmatpush1.bf16.msra.mxu0 0
    %188 = vmatprep.subr.bf16.mxu0 0
    %189 = vmatpush1.bf16.msra.mxu0 0
    %190 = vmatprep.subr.bf16.mxu0 0
    %191 = vmatpush1.bf16.msra.mxu0 0
    %192 = vmatprep.subr.bf16.mxu0 0
    %193 = vmatpush1.bf16.msra.mxu0 0
    %194 = vmatprep.mubr.bf16.mxu0 0
    %195 = vmatmul.mubr.bf16.gmra.mrb[0].mxu0 %v160
    %v196 = vpop.f32.mrb[0].mxu0
    %v197 = vadd.f32 %v152, %v196
    %v198 = vpop.f32.mrb[0].mxu0
    %v199 = vpop.f32.mrb[0].mxu0
    %v200 = vadd.f32 %v152, %v199
    %v201 = vpop.f32.mrb[0].mxu0
    %202 = vdwg.mxu0
    %v203 = vmax.f32 %v197, 0.0
    %v204 = vmax.f32 %v200, 0.0
    %v205 = vpack.c.bf16 %v204, %v203
    %s206 = scalar_lea.vmem [#allocation7], 16
    %v207 = vld [vmem:[%s206] sm:$0xf]
    %v208 = vld [vmem:[%s206 + $0x4] sm:$0xf]
    %v209 = vld [vmem:[%s206 + $0x8] sm:$0xf]
    %v210 = vld [vmem:[%s206 + $0xc] sm:$0xf]
    %v211 = vld [vmem:[%s3 + $0x1] sm:$0x1]
    %v216 = vunpack.c.l.b16 %v207
    %v217 = vunpack.c.l.b16 %v208
    %v218 = vunpack.c.l.b16 %v209
    %v219 = vunpack.c.l.b16 %v210
    %v220 = vpack.c.b16 %v217, %v216
    %v221 = vpack.c.b16 %v219, %v218
    %v225 = vsel %vm103, %v205, 0
    %227 = vmatprep.subr.bf16.mxu0 0
    %228 = vmatpush1.bf16.msra.mxu0 %v220
    %229 = vmatprep.subr.bf16.mxu0 0
    %230 = vmatpush1.bf16.msra.mxu0 %v221
    %231 = vmatprep.subr.bf16.mxu0 0
    %232 = vmatpush1.bf16.msra.mxu0 0
    %233 = vmatprep.subr.bf16.mxu0 0
    %234 = vmatpush1.bf16.msra.mxu0 0
    %235 = vmatprep.subr.bf16.mxu0 0
    %236 = vmatpush1.bf16.msra.mxu0 0
    %237 = vmatprep.subr.bf16.mxu0 0
    %238 = vmatpush1.bf16.msra.mxu0 0
    %239 = vmatprep.subr.bf16.mxu0 0
    %240 = vmatpush1.bf16.msra.mxu0 0
    %241 = vmatprep.subr.bf16.mxu0 0
    %242 = vmatpush1.bf16.msra.mxu0 0
    %243 = vmatprep.subr.bf16.mxu0 0
    %244 = vmatpush1.bf16.msra.mxu0 0
    %245 = vmatprep.subr.bf16.mxu0 0
    %246 = vmatpush1.bf16.msra.mxu0 0
    %247 = vmatprep.subr.bf16.mxu0 0
    %248 = vmatpush1.bf16.msra.mxu0 0
    %249 = vmatprep.subr.bf16.mxu0 0
    %250 = vmatpush1.bf16.msra.mxu0 0
    %251 = vmatprep.subr.bf16.mxu0 0
    %252 = vmatpush1.bf16.msra.mxu0 0
    %253 = vmatprep.subr.bf16.mxu0 0
    %254 = vmatpush1.bf16.msra.mxu0 0
    %255 = vmatprep.subr.bf16.mxu0 0
    %256 = vmatpush1.bf16.msra.mxu0 0
    %257 = vmatprep.subr.bf16.mxu0 0
    %258 = vmatpush1.bf16.msra.mxu0 0
    %259 = vmatprep.mubr.bf16.mxu0 0
    %260 = vmatmul.mubr.bf16.gmra.mrb[0].mxu0 %v225
    %v261 = vpop.f32.mrb[0].mxu0
    %v262 = vadd.f32 0.0, %v261
    %v263 = vpop.f32.mrb[0].mxu0
    %v264 = vpop.f32.mrb[0].mxu0
    %v265 = vadd.f32 0.0, %v264
    %v266 = vpop.f32.mrb[0].mxu0
    %267 = vdwg.mxu0
    %v268 = vpack.c.bf16 %v265, %v262
    %v269 = vlaneseq
    %v270 = vshrl.u32 %v269, 7
    %v271 = vsub.s32 0, %v270
    %v272 = vrot.slane %v211, %v271
    %273 = vmatprep.subr.bf16.mxu0 0
    %274 = vmatpush1.bf16.msra.mxu0 %v268
    %275 = vmatprep.subr.bf16.mxu0 0
    %276 = vmatpush1.bf16.msra.mxu0 0
    %277 = vmatprep.subr.bf16.mxu0 0
    %278 = vmatpush1.bf16.msra.mxu0 0
    %279 = vmatprep.subr.bf16.mxu0 0
    %280 = vmatpush1.bf16.msra.mxu0 0
    %281 = vmatprep.subr.bf16.mxu0 0
    %282 = vmatpush1.bf16.msra.mxu0 0
    %283 = vmatprep.subr.bf16.mxu0 0
    %284 = vmatpush1.bf16.msra.mxu0 0
    %285 = vmatprep.subr.bf16.mxu0 0
    %286 = vmatpush1.bf16.msra.mxu0 0
    %287 = vmatprep.subr.bf16.mxu0 0
    %288 = vmatpush1.bf16.msra.mxu0 0
    %289 = vmatprep.subr.bf16.mxu0 0
    %290 = vmatpush1.bf16.msra.mxu0 0
    %291 = vmatprep.subr.bf16.mxu0 0
    %292 = vmatpush1.bf16.msra.mxu0 0
    %293 = vmatprep.subr.bf16.mxu0 0
    %294 = vmatpush1.bf16.msra.mxu0 0
    %295 = vmatprep.subr.bf16.mxu0 0
    %296 = vmatpush1.bf16.msra.mxu0 0
    %297 = vmatprep.subr.bf16.mxu0 0
    %298 = vmatpush1.bf16.msra.mxu0 0
    %299 = vmatprep.subr.bf16.mxu0 0
    %300 = vmatpush1.bf16.msra.mxu0 0
    %301 = vmatprep.subr.bf16.mxu0 0
    %302 = vmatpush1.bf16.msra.mxu0 0
    %303 = vmatprep.subr.bf16.mxu0 0
    %304 = vmatpush1.bf16.msra.mxu0 0
    %305 = vmatprep.mubr.bf16.mxu0 0
    %306 = vmatmul.mubr.bf16.gmra.mrb[0].mxu0 %v160
    %v307 = vpop.f32.mrb[0].mxu0
    %v308 = vadd.f32 %v272, %v307
    %v309 = vpop.f32.mrb[0].mxu0
    %v310 = vpop.f32.mrb[0].mxu0
    %v311 = vadd.f32 %v272, %v310
    %v312 = vpop.f32.mrb[0].mxu0
    %313 = vdwg.mxu0
    %v314 = vmax.f32 %v308, 0.0
    %v315 = vmax.f32 %v311, 0.0
    %v316 = vpack.c.bf16 %v315, %v314
    %s317 = scalar_lea.vmem [#allocation7], 32
    %v318 = vld [vmem:[%s317] sm:$0xf]
    %v319 = vld [vmem:[%s317 + $0x4] sm:$0xf]
    %v320 = vld [vmem:[%s317 + $0x8] sm:$0xf]
    %v321 = vld [vmem:[%s317 + $0xc] sm:$0xf]
    %v322 = vld [vmem:[%s3 + $0x2] sm:$0x1]
    %v327 = vunpack.c.l.b16 %v318
    %v328 = vunpack.c.l.b16 %v319
    %v329 = vunpack.c.l.b16 %v320
    %v330 = vunpack.c.l.b16 %v321
    %v331 = vpack.c.b16 %v328, %v327
    %v332 = vpack.c.b16 %v330, %v329
    %v336 = vsel %vm103, %v316, 0
    %338 = vmatprep.subr.bf16.mxu0 0
    %339 = vmatpush1.bf16.msra.mxu0 %v331
    %340 = vmatprep.subr.bf16.mxu0 0
    %341 = vmatpush1.bf16.msra.mxu0 %v332
    %342 = vmatprep.subr.bf16.mxu0 0
    %343 = vmatpush1.bf16.msra.mxu0 0
    %344 = vmatprep.subr.bf16.mxu0 0
    %345 = vmatpush1.bf16.msra.mxu0 0
    %346 = vmatprep.subr.bf16.mxu0 0
    %347 = vmatpush1.bf16.msra.mxu0 0
    %348 = vmatprep.subr.bf16.mxu0 0
    %349 = vmatpush1.bf16.msra.mxu0 0
    %350 = vmatprep.subr.bf16.mxu0 0
    %351 = vmatpush1.bf16.msra.mxu0 0
    %352 = vmatprep.subr.bf16.mxu0 0
    %353 = vmatpush1.bf16.msra.mxu0 0
    %354 = vmatprep.subr.bf16.mxu0 0
    %355 = vmatpush1.bf16.msra.mxu0 0
    %356 = vmatprep.subr.bf16.mxu0 0
    %357 = vmatpush1.bf16.msra.mxu0 0
    %358 = vmatprep.subr.bf16.mxu0 0
    %359 = vmatpush1.bf16.msra.mxu0 0
    %360 = vmatprep.subr.bf16.mxu0 0
    %361 = vmatpush1.bf16.msra.mxu0 0
    %362 = vmatprep.subr.bf16.mxu0 0
    %363 = vmatpush1.bf16.msra.mxu0 0
    %364 = vmatprep.subr.bf16.mxu0 0
    %365 = vmatpush1.bf16.msra.mxu0 0
    %366 = vmatprep.subr.bf16.mxu0 0
    %367 = vmatpush1.bf16.msra.mxu0 0
    %368 = vmatprep.subr.bf16.mxu0 0
    %369 = vmatpush1.bf16.msra.mxu0 0
    %370 = vmatprep.mubr.bf16.mxu0 0
    %371 = vmatmul.mubr.bf16.gmra.mrb[0].mxu0 %v336
    %v372 = vpop.f32.mrb[0].mxu0
    %v373 = vadd.f32 0.0, %v372
    %v374 = vpop.f32.mrb[0].mxu0
    %v375 = vpop.f32.mrb[0].mxu0
    %v376 = vadd.f32 0.0, %v375
    %v377 = vpop.f32.mrb[0].mxu0
    %378 = vdwg.mxu0
    %v379 = vpack.c.bf16 %v376, %v373
    %v380 = vlaneseq
    %v381 = vshrl.u32 %v380, 7
    %v382 = vsub.s32 0, %v381
    %v383 = vrot.slane %v322, %v382
    %384 = vmatprep.subr.bf16.mxu0 0
    %385 = vmatpush1.bf16.msra.mxu0 %v379
    %386 = vmatprep.subr.bf16.mxu0 0
    %387 = vmatpush1.bf16.msra.mxu0 0
    %388 = vmatprep.subr.bf16.mxu0 0
    %389 = vmatpush1.bf16.msra.mxu0 0
    %390 = vmatprep.subr.bf16.mxu0 0
    %391 = vmatpush1.bf16.msra.mxu0 0
    %392 = vmatprep.subr.bf16.mxu0 0
    %393 = vmatpush1.bf16.msra.mxu0 0
    %394 = vmatprep.subr.bf16.mxu0 0
    %395 = vmatpush1.bf16.msra.mxu0 0
    %396 = vmatprep.subr.bf16.mxu0 0
    %397 = vmatpush1.bf16.msra.mxu0 0
    %398 = vmatprep.subr.bf16.mxu0 0
    %399 = vmatpush1.bf16.msra.mxu0 0
    %400 = vmatprep.subr.bf16.mxu0 0
    %401 = vmatpush1.bf16.msra.mxu0 0
    %402 = vmatprep.subr.bf16.mxu0 0
    %403 = vmatpush1.bf16.msra.mxu0 0
    %404 = vmatprep.subr.bf16.mxu0 0
    %405 = vmatpush1.bf16.msra.mxu0 0
    %406 = vmatprep.subr.bf16.mxu0 0
    %407 = vmatpush1.bf16.msra.mxu0 0
    %408 = vmatprep.subr.bf16.mxu0 0
    %409 = vmatpush1.bf16.msra.mxu0 0
    %410 = vmatprep.subr.bf16.mxu0 0
    %411 = vmatpush1.bf16.msra.mxu0 0
    %412 = vmatprep.subr.bf16.mxu0 0
    %413 = vmatpush1.bf16.msra.mxu0 0
    %414 = vmatprep.subr.bf16.mxu0 0
    %415 = vmatpush1.bf16.msra.mxu0 0
    %416 = vmatprep.mubr.bf16.mxu0 0
    %417 = vmatmul.mubr.bf16.gmra.mrb[0].mxu0 %v160
    %v418 = vpop.f32.mrb[0].mxu0
    %v419 = vadd.f32 %v383, %v418
    %v420 = vpop.f32.mrb[0].mxu0
    %v421 = vpop.f32.mrb[0].mxu0
    %v422 = vadd.f32 %v383, %v421
    %v423 = vpop.f32.mrb[0].mxu0
    %424 = vdwg.mxu0
    %v425 = vld [vmem:[#allocation8] sm:$0xff]
    %v426 = vld [vmem:[#allocation8 + $0x8] sm:$0xff]
    %v427 = vpack.c.bf16 %v422, %v419
    %428 = vxpose.xlu0.c.b16.start [1/8] %v427, 128
    %429 = vxpose.xlu0.c.b16.cont [2/8] 0, 128
    %430 = vxpose.xlu0.c.b16.cont [3/8] 0, 128
    %431 = vxpose.xlu0.c.b16.cont [4/8] 0, 128
    %432 = vxpose.xlu0.c.b16.cont [5/8] 0, 128
    %433 = vxpose.xlu0.c.b16.cont [6/8] 0, 128
    %434 = vxpose.xlu0.c.b16.cont [7/8] 0, 128
    %435 = vxpose.xlu0.c.b16.end [8/8] 0, 128
    %v436 = vpop.trf.xlu0
    %v437 = vpop.trf.xlu0
    %v438 = vpop.trf.xlu0
    %v439 = vpop.trf.xlu0
    %v440 = vpop.trf.xlu0
    %v441 = vpop.trf.xlu0
    %v442 = vpop.trf.xlu0
    %v443 = vpop.trf.xlu0
    %v446 = vunpack.c.l.b16 %v425
    %v447 = vunpack.c.h.b16 %v425
    %v448 = vunpack.c.l.b16 %v426
    %v449 = vunpack.c.h.b16 %v426
    %v450 = vpack.c.b16 %v448, %v446
    %v451 = vpack.c.b16 %v449, %v447
    %v455 = vsel %vm158, %v436, 0
    %v458 = vsel %vm158, %v437, 0
    %460 = vmatprep.subr.bf16.mxu0 %v451
    %461 = vmatpush1.bf16.msra.mxu0 %v450
    %462 = vmatprep.subr.bf16.mxu0 0
    %463 = vmatpush1.bf16.msra.mxu0 0
    %464 = vmatprep.subr.bf16.mxu0 0
    %465 = vmatpush1.bf16.msra.mxu0 0
    %466 = vmatprep.subr.bf16.mxu0 0
    %467 = vmatpush1.bf16.msra.mxu0 0
    %468 = vmatprep.subr.bf16.mxu0 0
    %469 = vmatpush1.bf16.msra.mxu0 0
    %470 = vmatprep.subr.bf16.mxu0 0
    %471 = vmatpush1.bf16.msra.mxu0 0
    %472 = vmatprep.subr.bf16.mxu0 0
    %473 = vmatpush1.bf16.msra.mxu0 0
    %474 = vmatprep.subr.bf16.mxu0 0
    %475 = vmatpush1.bf16.msra.mxu0 0
    %476 = vmatprep.subr.bf16.mxu0 0
    %477 = vmatpush1.bf16.msra.mxu0 0
    %478 = vmatprep.subr.bf16.mxu0 0
    %479 = vmatpush1.bf16.msra.mxu0 0
    %480 = vmatprep.subr.bf16.mxu0 0
    %481 = vmatpush1.bf16.msra.mxu0 0
    %482 = vmatprep.subr.bf16.mxu0 0
    %483 = vmatpush1.bf16.msra.mxu0 0
    %484 = vmatprep.subr.bf16.mxu0 0
    %485 = vmatpush1.bf16.msra.mxu0 0
    %486 = vmatprep.subr.bf16.mxu0 0
    %487 = vmatpush1.bf16.msra.mxu0 0
    %488 = vmatprep.subr.bf16.mxu0 0
    %489 = vmatpush1.bf16.msra.mxu0 0
    %490 = vmatprep.subr.bf16.mxu0 0
    %491 = vmatpush1.bf16.msra.mxu0 0
    %492 = vmatprep.mubr.bf16.mxu0 0
    %493 = vmatmul.mubr.bf16.gmra.mrb[0].mxu0 %v455
    %v494 = vpop.f32.mrb[0].mxu0
    %v495 = vadd.f32 0.0, %v494
    %v496 = vpop.f32.mrb[0].mxu0
    %v497 = vadd.f32 0.0, %v496
    %v498 = vpop.f32.mrb[0].mxu0
    %v499 = vadd.f32 0.0, %v498
    %v500 = vpop.f32.mrb[0].mxu0
    %v501 = vadd.f32 0.0, %v500
    %502 = vmatprep.mubr.bf16.mxu0 0
    %503 = vmatmul.mubr.bf16.gmra.mrb[0].mxu0 %v458
    %v504 = vpop.f32.mrb[0].mxu0
    %v505 = vadd.f32 0.0, %v504
    %v506 = vpop.f32.mrb[0].mxu0
    %v507 = vadd.f32 0.0, %v506
    %v508 = vpop.f32.mrb[0].mxu0
    %v509 = vadd.f32 0.0, %v508
    %v510 = vpop.f32.mrb[0].mxu0
    %v511 = vadd.f32 0.0, %v510
    %512 = vdwg.mxu0
    %v513 = vmul.f32 %v495, %v497
    %v514 = vmul.f32 %v499, %v501
    %v515 = vmul.f32 %v505, %v507
    %v516 = vmul.f32 %v509, %v511
    %v518 = vsel %vm103, 1.0, 0
    %520 = vmatprep.subr.mxu0 0.0
    %521 = vmatpush1.msra.mxu0 %v513
    %522 = vmatprep.subr.mxu0 0.0
    %523 = vmatpush1.msra.mxu0 %v514
    %524 = vmatprep.subr.mxu0 0.0
    %525 = vmatpush1.msra.mxu0 %v515
    %526 = vmatprep.subr.mxu0 0.0
    %527 = vmatpush1.msra.mxu0 %v516
    %528 = vmatprep.subr.mxu0 0.0
    %529 = vmatpush1.msra.mxu0 0.0
    %530 = vmatprep.subr.mxu0 0.0
    %531 = vmatpush1.msra.mxu0 0.0
    %532 = vmatprep.subr.mxu0 0.0
    %533 = vmatpush1.msra.mxu0 0.0
    %534 = vmatprep.subr.mxu0 0.0
    %535 = vmatpush1.msra.mxu0 0.0
    %536 = vmatprep.subr.mxu0 0.0
    %537 = vmatpush1.msra.mxu0 0.0
    %538 = vmatprep.subr.mxu0 0.0
    %539 = vmatpush1.msra.mxu0 0.0
    %540 = vmatprep.subr.mxu0 0.0
    %541 = vmatpush1.msra.mxu0 0.0
    %542 = vmatprep.subr.mxu0 0.0
    %543 = vmatpush1.msra.mxu0 0.0
    %544 = vmatprep.subr.mxu0 0.0
    %545 = vmatpush1.msra.mxu0 0.0
    %546 = vmatprep.subr.mxu0 0.0
    %547 = vmatpush1.msra.mxu0 0.0
    %548 = vmatprep.subr.mxu0 0.0
    %549 = vmatpush1.msra.mxu0 0.0
    %550 = vmatprep.subr.mxu0 0.0
    %551 = vmatpush1.msra.mxu0 0.0
    %552 = vmatprep.subr.mxu0 0.0
    %553 = vmatpush1.msra.mxu0 0.0
    %554 = vmatprep.subr.mxu0 0.0
    %555 = vmatpush1.msra.mxu0 0.0
    %556 = vmatprep.subr.mxu0 0.0
    %557 = vmatpush1.msra.mxu0 0.0
    %558 = vmatprep.subr.mxu0 0.0
    %559 = vmatpush1.msra.mxu0 0.0
    %560 = vmatprep.subr.mxu0 0.0
    %561 = vmatpush1.msra.mxu0 0.0
    %562 = vmatprep.subr.mxu0 0.0
    %563 = vmatpush1.msra.mxu0 0.0
    %564 = vmatprep.subr.mxu0 0.0
    %565 = vmatpush1.msra.mxu0 0.0
    %566 = vmatprep.subr.mxu0 0.0
    %567 = vmatpush1.msra.mxu0 0.0
    %568 = vmatprep.subr.mxu0 0.0
    %569 = vmatpush1.msra.mxu0 0.0
    %570 = vmatprep.subr.mxu0 0.0
    %571 = vmatpush1.msra.mxu0 0.0
    %572 = vmatprep.subr.mxu0 0.0
    %573 = vmatpush1.msra.mxu0 0.0
    %574 = vmatprep.subr.mxu0 0.0
    %575 = vmatpush1.msra.mxu0 0.0
    %576 = vmatprep.subr.mxu0 0.0
    %577 = vmatpush1.msra.mxu0 0.0
    %578 = vmatprep.subr.mxu0 0.0
    %579 = vmatpush1.msra.mxu0 0.0
    %580 = vmatprep.subr.mxu0 0.0
    %581 = vmatpush1.msra.mxu0 0.0
    %582 = vmatprep.subr.mxu0 0.0
    %583 = vmatpush1.msra.mxu0 0.0
    %584 = vmatprep.mubr.f32.mxu0 0.0
    %585 = vmatmul.mubr.f32.gmra.mrb[0].mxu0 %v518
    %v586 = vpop.f32.mrb[0].mxu0
    %v587 = vadd.f32 0.0, %v586
    %v588 = vpop.f32.mrb[0].mxu0
    %589 = vdwg.mxu0
    %590 = vst [vmem:[#allocation10] sm:$0x1] %v587
    // Predicated region
    $region38: #{gcn_forward_staged.1} parent=1 // pred_check
      _
    $region39: #{gcn_forward_staged.1} parent=1 // pred_check_branch
      %592 = sbr.rel (0) target = $region41
    $region40: #{gcn_forward_staged.1} parent=1 // pred_region
      %s594 = ssub.s32 16, 16
      %595 = vsyncadd [#allocation4], %s594
      %s597 = sshll.u32 [#allocation10], 4
      %s598 = int_to_ptr.vmem [resolvable:$true] %s597
      %600 = dma.vmem_to_hbm [thread:$0]  %s598, 16, %s5, [#allocation4]
    $region41: #{gcn_forward_staged.1} parent=1 // pred_fallthru
      _
    // Predicated region
    $region42: #{gcn_forward_staged.1} parent=1 // pred_check
      _
    $region43: #{gcn_forward_staged.1} parent=1 // pred_check_branch
      %602 = sbr.rel (0) target = $region45
    $region44: #{gcn_forward_staged.1} parent=1 // pred_region
      %603 = dma.done [#allocation4], 16
    $region45: #{gcn_forward_staged.1} parent=1 // pred_fallthru
      _
    %604 = vsyncpa [#allocation3], 1
    %605 = vsyncpa [#allocation6], 1
    %606 = vsyncpa [#allocation9], 1
    %607 = vsyncpa [#allocation4], 1

</llo_original>
